<compile_context>
chip_gen: v6e
topology: v6e:2x2x1
jax: 0.10.0
libtpu: 0.0.40
codegen_flags: <defaults>
</compile_context>

<pallas_src>
import functools

import jax
import jax.numpy as jnp
from jax.experimental import pallas as pl
from jax.experimental.pallas import tpu as pltpu


# ---------------------------------------------------------------------------
# kernels
# ---------------------------------------------------------------------------
def _linear_head(pooled_f32, w1_ref, b1_ref, w2_ref, b2_ref, matmul_dtype):
    """tanh(pooled @ W1 + b1) @ W2 + b2 with weights in (in, out) layout."""
    x = pooled_f32.astype(matmul_dtype)
    z1 = jnp.dot(x, w1_ref[...], preferred_element_type=jnp.float32)
    a1 = jnp.tanh(z1 + b1_ref[...])                               # (tb, H) f32
    z2 = jnp.dot(a1.astype(matmul_dtype), w2_ref[...],
                 preferred_element_type=jnp.float32)
    return z2 + b2_ref[...]                                       # (tb, L) f32


def _token_pool_kernel(tok_ref, w1_ref, b1_ref, w2_ref, b2_ref, out_ref, *,
                       matmul_dtype):
    """'first' / 'last' pooling: token row already extracted in the wrapper."""
    pooled = tok_ref[...].astype(jnp.float32)                     # (tb, H)
    out_ref[...] = _linear_head(pooled, w1_ref, b1_ref, w2_ref, b2_ref,
                                matmul_dtype).astype(out_ref.dtype)


def _reduce_pool_kernel(hidden_ref, w1_ref, b1_ref, w2_ref, b2_ref, out_ref,
                        acc_ref, *, pooling, inv_s, matmul_dtype):
    """'mean' / 'max' pooling with the sequence axis as a grid reduction."""
    s = pl.program_id(1)

    @pl.when(s == 0)
    def _init():
        if pooling == "mean":
            acc_ref[...] = jnp.zeros(acc_ref.shape, acc_ref.dtype)
        else:                                                      # max
            acc_ref[...] = jnp.full(acc_ref.shape, -jnp.inf, acc_ref.dtype)

    h = hidden_ref[...].astype(jnp.float32)                        # (tb, ts, H)
    if pooling == "mean":
        acc_ref[...] = acc_ref[...] + jnp.sum(h, axis=1)
    else:
        acc_ref[...] = jnp.maximum(acc_ref[...], jnp.max(h, axis=1))

    @pl.when(s == pl.num_programs(1) - 1)
    def _finalize():
        pooled = acc_ref[...]
        if pooling == "mean":
            pooled = pooled * inv_s           # one scale at finalize, not per-tile
        out_ref[...] = _linear_head(pooled, w1_ref, b1_ref, w2_ref, b2_ref,
                                    matmul_dtype).astype(out_ref.dtype)


# ---------------------------------------------------------------------------
# tiling helpers
# ---------------------------------------------------------------------------
def _largest_divisor_multiple(dim, cap, step=8):
    """Largest divisor of `dim` that is a multiple of `step` and <= cap."""
    cand = min(cap, dim)
    cand -= cand % step
    while cand >= step:
        if dim % cand == 0:
            return cand
        cand -= step
    return None


def _pick_batch_block(B, cap):
    """Batch tile: keep >= 2 steps on the parallel grid axis when B >= 16 so
    both TensorCores on a v7x megacore get work; otherwise take the full
    extent (always (8,128)-legal as the full array dim)."""
    if B >= 16:
        cap = min(cap, max(8, B // 2))
    if B <= cap:
        return B
    return _largest_divisor_multiple(B, cap) or B


def _vmem_ceiling_bytes():
    """VMEM clamp with headroom: ~75% of physical per-core VMEM (48 MiB on
    v7x, 96 MiB on v5e/v6e); conservative fallback if the query fails."""
    try:
        info = pltpu.get_tpu_info()
        cap = int(getattr(info, "vmem_capacity_bytes", 0) or 0)
        if cap > 0:
            return (cap * 3) // 4
    except Exception:
        pass
    return 48 * 1024 * 1024


# ---------------------------------------------------------------------------
# wrapper
# ---------------------------------------------------------------------------
def dense_mini_classifier(hidden, mask, params, pooling="first",
                          matmul_dtype=jnp.float32):
    """Forward pass.  `mask` is ignored, matching the PyTorch reference."""
    del mask
    B, S, H = hidden.shape
    itemsize = jnp.dtype(hidden.dtype).itemsize

    # Pre-transpose weights once to (in, out) layout (H^2 HBM cost, negligible
    # vs B*S*H) so the in-kernel matmuls contract on the RHS major dim and no
    # XLU transpose can appear on the finalize step.  Optional bf16 cast keeps
    # the MXU on its native path (v6e/v7x) and halves resident-weight VMEM.
    w1 = params["w1"].T.astype(matmul_dtype)                 # (H, H)
    w2 = params["w2"].T.astype(matmul_dtype)                 # (H, L)
    b1 = params["b1"].reshape(1, H).astype(jnp.float32)      # (1, H)
    b2 = params["b2"].reshape(1, -1).astype(jnp.float32)     # (1, L)
    L = w2.shape[1]

    weight_bytes = sum(int(x.size) * jnp.dtype(x.dtype).itemsize
                       for x in (w1, b1, w2, b2))

    tile_budget = 6 * 1024 * 1024     # target bytes per hidden streaming buffer

    if pooling in ("mean", "max"):
        tb = _pick_batch_block(B, 128)
        # If even a minimal (tb, 8, H) tile blows the budget (large H), shrink
        # tb (staying a mult-of-8 divisor of B) instead of overshooting.
        while tb > 8 and tb * 8 * H * itemsize > tile_budget:
            smaller = _largest_divisor_multiple(B, tb // 2)
            if smaller is None or smaller >= tb:
                break
            tb = smaller
        ts_cap = max(8, tile_budget // max(1, tb * H * itemsize))
        ts = S if S <= ts_cap else (_largest_divisor_multiple(S, ts_cap) or S)

        grid = (B // tb, S // ts)
        kernel = functools.partial(_reduce_pool_kernel, pooling=pooling,
                                   inv_s=1.0 / S, matmul_dtype=matmul_dtype)
        in_specs = [
            pl.BlockSpec((tb, ts, H), lambda b, s: (b, s, 0)),
            pl.BlockSpec((H, H), lambda b, s: (0, 0)),   # weights resident
            pl.BlockSpec((1, H), lambda b, s: (0, 0)),
            pl.BlockSpec((H, L), lambda b, s: (0, 0)),
            pl.BlockSpec((1, L), lambda b, s: (0, 0)),
        ]
        out_specs = pl.BlockSpec((tb, L), lambda b, s: (b, 0))
        scratch_shapes = [pltpu.VMEM((tb, H), jnp.float32)]
        dim_sem = ("parallel", "arbitrary")
        operands = (hidden, w1, b1, w2, b2)
        hidden_tile_bytes = tb * ts * H * itemsize
        hbm_hidden_bytes = int(hidden.size) * itemsize
        acc_bytes = tb * H * 4
        pool_flops = B * S * H
    else:
        # 'last' / default (first token): slice the single token row in the
        # wrapper (one strided XLA copy, B*H elements) and stream only that —
        # ~8x less HBM traffic than fetching an 8-row slab per batch tile.
        tok = hidden[:, S - 1 if pooling == "last" else 0, :]     # (B, H)
        tb = _pick_batch_block(B, 256)
        grid = (B // tb,)
        kernel = functools.partial(_token_pool_kernel, matmul_dtype=matmul_dtype)
        in_specs = [
            pl.BlockSpec((tb, H), lambda b: (b, 0)),
            pl.BlockSpec((H, H), lambda b: (0, 0)),
            pl.BlockSpec((1, H), lambda b: (0, 0)),
            pl.BlockSpec((H, L), lambda b: (0, 0)),
            pl.BlockSpec((1, L), lambda b: (0, 0)),
        ]
        out_specs = pl.BlockSpec((tb, L), lambda b: (b, 0))
        scratch_shapes = []
        dim_sem = ("parallel",)
        operands = (tok, w1, b1, w2, b2)
        hidden_tile_bytes = tb * H * itemsize
        hbm_hidden_bytes = B * H * itemsize
        acc_bytes = 0
        pool_flops = 0

    # VMEM accounting: every auto-pipelined input/output gets 2 buffers by
    # default — including the grid-invariant weights — so count them at 2x.
    # (Buffered(1) on the weight specs would reclaim half of that; counting it
    # is the safe, always-compiles alternative.)
    vmem_bytes = int(2 * hidden_tile_bytes + 2 * weight_bytes
                     + 2 * tb * L * 4 + acc_bytes + (1 << 20))
    vmem_limit = int(min(max(vmem_bytes, 16 * 1024 * 1024), _vmem_ceiling_bytes()))

    cost = pl.CostEstimate(
        flops=int(2 * B * H * (H + L) + pool_flops),
        transcendentals=int(B * H),
        bytes_accessed=int(hbm_hidden_bytes + weight_bytes + B * L * 4),
    )

    return pl.pallas_call(
        kernel,
        out_shape=jax.ShapeDtypeStruct((B, L), jnp.float32),
        grid=grid,
        in_specs=in_specs,
        out_specs=out_specs,
        scratch_shapes=scratch_shapes,
        compiler_params=pltpu.CompilerParams(
            dimension_semantics=dim_sem,
            vmem_limit_bytes=vmem_limit),
        cost_estimate=cost,
    )(*operands)


# ---------------------------------------------------------------------------
# test harness
# ---------------------------------------------------------------------------
def _init_params(key, input_size, labels_num):
    """Deterministic PyTorch-Linear-style init (uniform +-1/sqrt(fan_in))."""
    k1, k2, k3, k4 = jax.random.split(key, 4)
    bound1 = 1.0 / jnp.sqrt(input_size)
    return {
        "w1": jax.random.uniform(k1, (input_size, input_size), jnp.float32,
                                 -bound1, bound1),
        "b1": jax.random.uniform(k2, (input_size,), jnp.float32,
                                 -bound1, bound1),
        "w2": jax.random.uniform(k3, (labels_num, input_size), jnp.float32,
                                 -bound1, bound1),
        "b2": jax.random.uniform(k4, (labels_num,), jnp.float32,
                                 -bound1, bound1),
    }


def _reference(hidden, params, pooling):
    """Pure-JAX reference for a sanity check."""
    if pooling == "mean":
        pooled = jnp.mean(hidden, axis=1)
    elif pooling == "max":
        pooled = jnp.max(hidden, axis=1)
    elif pooling == "last":
        pooled = hidden[:, -1, :]
    else:
        pooled = hidden[:, 0, :]
    a1 = jnp.tanh(pooled @ params["w1"].T + params["b1"])
    return a1 @ params["w2"].T + params["b2"]


if __name__ == "__main__":
    B, S, H, L = 2, 8, 32, 4

    key = jax.random.PRNGKey(0)
    k_hidden, k_params = jax.random.split(key)

    hidden = jax.random.normal(k_hidden, (B, S, H), dtype=jnp.float32)
    mask = jnp.ones((B, S), dtype=jnp.float32)   # unused by forward
    params = _init_params(k_params, H, L)

    # f32 head matmuls: tight tolerance against the pure-JAX reference.
    for pooling in ("mean", "max", "last", "first"):
        logits = dense_mini_classifier(hidden, mask, params, pooling=pooling)
        logits = jax.block_until_ready(logits)
        ref = _reference(hidden, params, pooling)
        assert logits.shape == (B, L)
        assert jnp.allclose(logits, ref, atol=1e-5, rtol=1e-5), pooling

    # bf16 head matmuls (MXU-native on v6e/v7x): loose tolerance.
    for pooling in ("mean", "first"):
        logits = dense_mini_classifier(hidden, mask, params, pooling=pooling,
                                       matmul_dtype=jnp.bfloat16)
        logits = jax.block_until_ready(logits)
        ref = _reference(hidden, params, pooling)
        assert jnp.allclose(logits, ref, atol=5e-2, rtol=5e-2), ("bf16", pooling)

    print("KERNEL_OK")
</pallas_src>

<mosaic_0001>
module attributes {stable_mosaic.version = 11 : i64} {
  func.func @_reduce_pool_kernel(%arg0: i32, %arg1: i32, %arg2: memref<2x8x32xf32, #tpu.memory_space<vmem>>, %arg3: memref<32x32xf32, #tpu.memory_space<vmem>>, %arg4: memref<1x32xf32, #tpu.memory_space<vmem>>, %arg5: memref<32x4xf32, #tpu.memory_space<vmem>>, %arg6: memref<1x4xf32, #tpu.memory_space<vmem>>, %arg7: memref<2x4xf32, #tpu.memory_space<vmem>>, %arg8: memref<2x32xf32, #tpu.memory_space<vmem>>) attributes {dimension_semantics = [#tpu.dimension_semantics<parallel>, #tpu.dimension_semantics<arbitrary>], iteration_bounds = array<i64: 1, 1>, scalar_prefetch = 0 : i64, scratch_operands = 1 : i64, tpu.core_type = #tpu.core_type<tc>, window_params = [{transform_indices = @transform_0, window_bounds = array<i64: 2, 8, 32>}, {pipeline_mode = #tpu.pipeline_mode<synchronous>, transform_indices = @transform_1, window_bounds = array<i64: 32, 32>}, {pipeline_mode = #tpu.pipeline_mode<synchronous>, transform_indices = @transform_2, window_bounds = array<i64: 1, 32>}, {pipeline_mode = #tpu.pipeline_mode<synchronous>, transform_indices = @transform_3, window_bounds = array<i64: 32, 4>}, {pipeline_mode = #tpu.pipeline_mode<synchronous>, transform_indices = @transform_4, window_bounds = array<i64: 1, 4>}, {transform_indices = @transform_5, window_bounds = array<i64: 2, 4>}]} {
    %c0_i32 = arith.constant 0 : i32
    %0 = arith.cmpi eq, %arg1, %c0_i32 : i32
    %1 = arith.extui %0 : i1 to i32
    %c0_i32_0 = arith.constant 0 : i32
    %2 = arith.cmpi ne, %1, %c0_i32_0 : i32
    scf.if %2 {
      %cst_9 = arith.constant 0.000000e+00 : f32
      %11 = vector.broadcast %cst_9 : f32 to vector<2x32xf32>
      %c0_10 = arith.constant 0 : index
      %c0_11 = arith.constant 0 : index
      %12 = vector.load %arg8[%c0_10, %c0_11] : memref<2x32xf32, #tpu.memory_space<vmem>>, vector<2x32xf32>
      tpu.vector_store %arg8[%c0_10, %c0_11], %11 {strides = array<i32>} : memref<2x32xf32, #tpu.memory_space<vmem>>, vector<2x32xf32>,
    } else {
    }
    %c0 = arith.constant 0 : index
    %c0_1 = arith.constant 0 : index
    %c0_2 = arith.constant 0 : index
    %3 = vector.load %arg2[%c0, %c0_1, %c0_2] : memref<2x8x32xf32, #tpu.memory_space<vmem>>, vector<2x8x32xf32>
    %c0_3 = arith.constant 0 : index
    %c0_4 = arith.constant 0 : index
    %4 = vector.load %arg8[%c0_3, %c0_4] : memref<2x32xf32, #tpu.memory_space<vmem>>, vector<2x32xf32>
    %cst = arith.constant dense<0.000000e+00> : vector<2x32xf32>
    %5 = vector.multi_reduction <add>, %3, %cst [1] : vector<2x8x32xf32> to vector<2x32xf32>
    %6 = arith.addf %4, %5 : vector<2x32xf32>
    %c0_5 = arith.constant 0 : index
    %c0_6 = arith.constant 0 : index
    %7 = vector.load %arg8[%c0_5, %c0_6] : memref<2x32xf32, #tpu.memory_space<vmem>>, vector<2x32xf32>
    tpu.vector_store %arg8[%c0_5, %c0_6], %6 {strides = array<i32>} : memref<2x32xf32, #tpu.memory_space<vmem>>, vector<2x32xf32>,
    %c0_i32_7 = arith.constant 0 : i32
    %8 = arith.cmpi eq, %arg1, %c0_i32_7 : i32
    %9 = arith.extui %8 : i1 to i32
    %c0_i32_8 = arith.constant 0 : i32
    %10 = arith.cmpi ne, %9, %c0_i32_8 : i32
    scf.if %10 {
      %c0_9 = arith.constant 0 : index
      %c0_10 = arith.constant 0 : index
      %11 = vector.load %arg8[%c0_9, %c0_10] : memref<2x32xf32, #tpu.memory_space<vmem>>, vector<2x32xf32>
      %cst_11 = arith.constant 1.250000e-01 : f32
      %12 = vector.broadcast %cst_11 : f32 to vector<2x32xf32>
      %13 = arith.mulf %11, %12 : vector<2x32xf32>
      %c0_12 = arith.constant 0 : index
      %c0_13 = arith.constant 0 : index
      %14 = vector.load %arg3[%c0_12, %c0_13] : memref<32x32xf32, #tpu.memory_space<vmem>>, vector<32x32xf32>
      %cst_14 = arith.constant dense<0.000000e+00> : vector<2x32xf32>
      %15 = tpu.matmul %13, %14, %cst_14 {dimension_numbers = #tpu.dot_dimension_numbers<[1], [0], [0], [1], [0, 0, 1, 1], [], []>} : vector<2x32xf32>, vector<32x32xf32>, vector<2x32xf32> -> vector<2x32xf32>
      %c0_15 = arith.constant 0 : index
      %c0_16 = arith.constant 0 : index
      %16 = vector.load %arg4[%c0_15, %c0_16] : memref<1x32xf32, #tpu.memory_space<vmem>>, vector<1x32xf32>
      %17 = vector.broadcast %16 : vector<1x32xf32> to vector<2x32xf32>
      %18 = arith.addf %15, %17 : vector<2x32xf32>
      %19 = math.tanh %18 : vector<2x32xf32>
      %c0_17 = arith.constant 0 : index
      %c0_18 = arith.constant 0 : index
      %20 = vector.load %arg5[%c0_17, %c0_18] : memref<32x4xf32, #tpu.memory_space<vmem>>, vector<32x4xf32>
      %cst_19 = arith.constant dense<0.000000e+00> : vector<2x4xf32>
      %21 = tpu.matmul %19, %20, %cst_19 {dimension_numbers = #tpu.dot_dimension_numbers<[1], [0], [0], [1], [0, 0, 1, 1], [], []>} : vector<2x32xf32>, vector<32x4xf32>, vector<2x4xf32> -> vector<2x4xf32>
      %c0_20 = arith.constant 0 : index
      %c0_21 = arith.constant 0 : index
      %22 = vector.load %arg6[%c0_20, %c0_21] : memref<1x4xf32, #tpu.memory_space<vmem>>, vector<1x4xf32>
      %23 = vector.broadcast %22 : vector<1x4xf32> to vector<2x4xf32>
      %24 = arith.addf %21, %23 : vector<2x4xf32>
      %c0_22 = arith.constant 0 : index
      %c0_23 = arith.constant 0 : index
      %25 = vector.load %arg7[%c0_22, %c0_23] : memref<2x4xf32, #tpu.memory_space<vmem>>, vector<2x4xf32>
      tpu.vector_store %arg7[%c0_22, %c0_23], %24 {strides = array<i32>} : memref<2x4xf32, #tpu.memory_space<vmem>>, vector<2x4xf32>,
    } else {
    }
    return
  }
  func.func @transform_0(%arg0: i32, %arg1: i32) -> (i32, i32, i32) {
    %c0_i32 = arith.constant 0 : i32
    %c0_i32_0 = arith.constant 0 : i32
    return %arg0, %arg1, %c0_i32 : i32, i32, i32
  }
  func.func @transform_1(%arg0: i32, %arg1: i32) -> (i32, i32) {
    %c0_i32 = arith.constant 0 : i32
    %c0_i32_0 = arith.constant 0 : i32
    %c0_i32_1 = arith.constant 0 : i32
    return %c0_i32, %c0_i32_0 : i32, i32
  }
  func.func @transform_2(%arg0: i32, %arg1: i32) -> (i32, i32) {
    %c0_i32 = arith.constant 0 : i32
    %c0_i32_0 = arith.constant 0 : i32
    %c0_i32_1 = arith.constant 0 : i32
    return %c0_i32, %c0_i32_0 : i32, i32
  }
  func.func @transform_3(%arg0: i32, %arg1: i32) -> (i32, i32) {
    %c0_i32 = arith.constant 0 : i32
    %c0_i32_0 = arith.constant 0 : i32
    %c0_i32_1 = arith.constant 0 : i32
    return %c0_i32, %c0_i32_0 : i32, i32
  }
  func.func @transform_4(%arg0: i32, %arg1: i32) -> (i32, i32) {
    %c0_i32 = arith.constant 0 : i32
    %c0_i32_0 = arith.constant 0 : i32
    %c0_i32_1 = arith.constant 0 : i32
    return %c0_i32, %c0_i32_0 : i32, i32
  }
  func.func @transform_5(%arg0: i32, %arg1: i32) -> (i32, i32) {
    %c0_i32 = arith.constant 0 : i32
    %c0_i32_0 = arith.constant 0 : i32
    return %arg0, %c0_i32 : i32, i32
  }
}

</mosaic_0001>

<llo_original>
// kernel: tpu_custom_call.1
$region0: #{tpu_custom_call.1}
  #allocation0 [shape = 'u32[]', space=smem, size = 0x4, offset = 0x4, fixed_abs, tag = 'smem constant byte address 0x4 - core index']
  #allocation1 [shape = 'u32[144,128]{1,0:T(1,128)}', space=vmem, size = 0x12000, scoped, tag = 'internal scratch']
  #allocation2 [shape = 'f32[2,32]{1,0:T(2,128)}', space=vmem, size = 0x400, scoped, tag = 'scratch operand']
  %s0 = inlined_call_operand.hbm [shape: f32[2,8,32], index: 0, kind: input, shape index: {}]
  %s1 = inlined_call_operand.vmem [shape: f32[32,32], index: 1, kind: input, shape index: {}]
  %s2 = inlined_call_operand.vmem [shape: f32[1,32], index: 2, kind: input, shape index: {}]
  %s3 = inlined_call_operand.vmem [shape: f32[32,4], index: 3, kind: input, shape index: {}]
  %s4 = inlined_call_operand.vmem [shape: f32[1,4], index: 4, kind: input, shape index: {}]
  %s5 = inlined_call_operand.hbm [shape: f32[2,4], index: 5, kind: output, shape index: {}]
  %s6 = sld [smem:[#allocation0]]
  $region42: #{tpu_custom_call.1} parent=0
    _
  %s8 = ssub.s32 1, %s6
  %s9 = scalar_select 0, %s8, %s6
  $region1: #{tpu_custom_call.1} parent=0
    #allocation3 [shape = 'u8[8192]{0}', space=vmem, size = 0x2000, scoped, tag = 'input window, operand 0, single buffered']
    #allocation4 [shape = 's32[1]{0}', space=sflag, size = 0x4, scoped, tag = 'scoped memory for tpu_custom_call.1']
    #allocation5 [shape = 's32[1]{0}', space=sflag, size = 0x4, scoped, tag = 'scoped memory for tpu_custom_call.1']
    #allocation6 [shape = 'u8[1024]{0}', space=vmem, size = 0x400, scoped, tag = 'output window, operand 0, single buffered']
    %10 = vsyncpa [#allocation4], 0
    %11 = vsyncpa [#allocation5], 0
    // Predicated region
    $region2: #{tpu_custom_call.1} parent=1 // pred_check
      _
    $region3: #{tpu_custom_call.1} parent=1 // pred_check_branch
      %13 = sbr.rel (0) target = $region5
    $region4: #{tpu_custom_call.1} parent=1 // pred_region
      %s15 = ssub.s32 256, 256
      %16 = vsyncadd [#allocation4], %s15
      %s17 = sshll.u32 [#allocation3], 4
      %s18 = int_to_ptr.vmem [resolvable:$true] %s17
      %23 = dma.hbm_to_vmem [thread:$0]  %s0, 256, %s18, [#allocation4], 128, 128, 8
    $region5: #{tpu_custom_call.1} parent=1 // pred_fallthru
      _
    // Predicated region
    $region6: #{tpu_custom_call.1} parent=1 // pred_check
      _
    $region7: #{tpu_custom_call.1} parent=1 // pred_check_branch
      %25 = sbr.rel (0) target = $region9
    $region8: #{tpu_custom_call.1} parent=1 // pred_region
      _
    $region9: #{tpu_custom_call.1} parent=1 // pred_fallthru
      _
    // Predicated region
    $region10: #{tpu_custom_call.1} parent=1 // pred_check
      _
    $region11: #{tpu_custom_call.1} parent=1 // pred_check_branch
      %27 = sbr.rel (0) target = $region13
    $region12: #{tpu_custom_call.1} parent=1 // pred_region
      _
    $region13: #{tpu_custom_call.1} parent=1 // pred_fallthru
      _
    // Predicated region
    $region14: #{tpu_custom_call.1} parent=1 // pred_check
      _
    $region15: #{tpu_custom_call.1} parent=1 // pred_check_branch
      %29 = sbr.rel (0) target = $region17
    $region16: #{tpu_custom_call.1} parent=1 // pred_region
      _
    $region17: #{tpu_custom_call.1} parent=1 // pred_fallthru
      _
    // Predicated region
    $region18: #{tpu_custom_call.1} parent=1 // pred_check
      _
    $region19: #{tpu_custom_call.1} parent=1 // pred_check_branch
      %31 = sbr.rel (0) target = $region21
    $region20: #{tpu_custom_call.1} parent=1 // pred_region
      _
    $region21: #{tpu_custom_call.1} parent=1 // pred_fallthru
      _
    // Predicated region
    $region22: #{tpu_custom_call.1} parent=1 // pred_check
      _
    $region23: #{tpu_custom_call.1} parent=1 // pred_check_branch
      %33 = sbr.rel (0) target = $region25
    $region24: #{tpu_custom_call.1} parent=1 // pred_region
      %34 = dma.done [#allocation4], 256
    $region25: #{tpu_custom_call.1} parent=1 // pred_fallthru
      _
    %p35 = scmp.eq.s32.totalorder 0, 0
    // Predicated region
    $region26: #{tpu_custom_call.1} parent=1 // pred_check
      %p36 = pneg %p35
    $region27: #{tpu_custom_call.1} parent=1 // pred_check_branch
      %38 = sbr.rel (%p36) target = $region29
    $region28: #{tpu_custom_call.1} parent=1 // pred_region
      %vm39 = vcmask 254976
      %40 = vst.msk [vmem:[#allocation2] sm:$0x3] %vm39, 0.0
    $region29: #{tpu_custom_call.1} parent=1 // pred_fallthru
      _
    %v41 = vld [vmem:[#allocation3] sm:$0xff]
    %v42 = vld [vmem:[#allocation3 + $0x8] sm:$0xff]
    %v43 = vld [vmem:[#allocation2] sm:$0x3]
    %vm44 = vcmask 261120
    %v45 = vsel %vm44, %v41, 0.0
    %v46 = vrot.slane %v45, 4
    %v47 = vadd.f32 %v45, %v46
    %v48 = vrot.slane %v47, 2
    %v49 = vadd.f32 %v47, %v48
    %v50 = vrot.slane %v49, 1
    %v51 = vadd.f32 %v49, %v50
    %v52 = vsel %vm44, %v42, 0.0
    %v53 = vrot.slane %v52, 4
    %v54 = vadd.f32 %v52, %v53
    %v55 = vrot.slane %v54, 2
    %v56 = vadd.f32 %v54, %v55
    %v57 = vrot.slane %v56, 1
    %v58 = vadd.f32 %v56, %v57
    %vm61 = vcmask 1041409
    %v62 = vsel %vm61, %v58, %v51
    %v64 = vadd.f32 %v43, %v62
    %vm65 = vcmask 254976
    %66 = vst.msk [vmem:[#allocation2] sm:$0x3] %vm65, %v64
    // Predicated region
    $region30: #{tpu_custom_call.1} parent=1 // pred_check
      %p67 = pneg %p35
    $region31: #{tpu_custom_call.1} parent=1 // pred_check_branch
      %69 = sbr.rel (%p67) target = $region33
    $region32: #{tpu_custom_call.1} parent=1 // pred_region
      %v70 = vld [vmem:[#allocation2] sm:$0x3]
      %v71 = vmul.f32 %v70, 0.125
      %v72 = vld [vmem:[%s1] sm:$0xff]
      %v73 = vld [vmem:[%s1 + $0x8] sm:$0xff]
      %v74 = vld [vmem:[%s1 + $0x10] sm:$0xff]
      %v75 = vld [vmem:[%s1 + $0x18] sm:$0xff]
      %v76 = vld [vmem:[%s2] sm:$0x1]
      %v78 = vlaneseq
      %v79 = vshrl.u32 %v78, 7
      %v80 = vsub.s32 0, %v79
      %v81 = vrot.slane %v76, %v80
      %v84 = vsel %vm44, %v71, 0
      %86 = vmatprep.subr.mxu0 0.0
      %87 = vmatpush1.msra.mxu0 0.0
      %88 = vmatprep.subr.mxu0 0.0
      %89 = vmatpush1.msra.mxu0 0.0
      %90 = vmatprep.subr.mxu0 0.0
      %91 = vmatpush1.msra.mxu0 0.0
      %92 = vmatprep.subr.mxu0 0.0
      %93 = vmatpush1.msra.mxu0 0.0
      %94 = vmatprep.subr.mxu0 0.0
      %95 = vmatpush1.msra.mxu0 0.0
      %96 = vmatprep.subr.mxu0 0.0
      %97 = vmatpush1.msra.mxu0 0.0
      %98 = vmatprep.subr.mxu0 0.0
      %99 = vmatpush1.msra.mxu0 0.0
      %100 = vmatprep.subr.mxu0 0.0
      %101 = vmatpush1.msra.mxu0 0.0
      %102 = vmatprep.subr.mxu0 0.0
      %103 = vmatpush1.msra.mxu0 0.0
      %104 = vmatprep.subr.mxu0 0.0
      %105 = vmatpush1.msra.mxu0 0.0
      %106 = vmatprep.subr.mxu0 0.0
      %107 = vmatpush1.msra.mxu0 0.0
      %108 = vmatprep.subr.mxu0 0.0
      %109 = vmatpush1.msra.mxu0 0.0
      %110 = vmatprep.subr.mxu0 0.0
      %111 = vmatpush1.msra.mxu0 %v75
      %112 = vmatprep.subr.mxu0 0.0
      %113 = vmatpush1.msra.mxu0 %v74
      %114 = vmatprep.subr.mxu0 0.0
      %115 = vmatpush1.msra.mxu0 %v73
      %116 = vmatprep.subr.mxu0 0.0
      %117 = vmatpush1.msra.mxu0 %v72
      %118 = vmatprep.subr.mxu0 0.0
      %119 = vmatpush2.msra.mxu0 0.0
      %120 = vmatprep.subr.mxu0 0.0
      %121 = vmatpush2.msra.mxu0 0.0
      %122 = vmatprep.subr.mxu0 0.0
      %123 = vmatpush2.msra.mxu0 0.0
      %124 = vmatprep.subr.mxu0 0.0
      %125 = vmatpush2.msra.mxu0 0.0
      %126 = vmatprep.subr.mxu0 0.0
      %127 = vmatpush2.msra.mxu0 0.0
      %128 = vmatprep.subr.mxu0 0.0
      %129 = vmatpush2.msra.mxu0 0.0
      %130 = vmatprep.subr.mxu0 0.0
      %131 = vmatpush2.msra.mxu0 0.0
      %132 = vmatprep.subr.mxu0 0.0
      %133 = vmatpush2.msra.mxu0 0.0
      %134 = vmatprep.subr.mxu0 0.0
      %135 = vmatpush2.msra.mxu0 0.0
      %136 = vmatprep.subr.mxu0 0.0
      %137 = vmatpush2.msra.mxu0 0.0
      %138 = vmatprep.subr.mxu0 0.0
      %139 = vmatpush2.msra.mxu0 0.0
      %140 = vmatprep.subr.mxu0 0.0
      %141 = vmatpush2.msra.mxu0 0.0
      %142 = vmatprep.subr.mxu0 0.0
      %143 = vmatpush2.msra.mxu0 0.0
      %144 = vmatprep.subr.mxu0 0.0
      %145 = vmatpush2.msra.mxu0 0.0
      %146 = vmatprep.subr.mxu0 0.0
      %147 = vmatpush2.msra.mxu0 0.0
      %148 = vmatprep.subr.mxu0 0.0
      %149 = vmatpush2.msra.mxu0 0.0
      %150 = vmatprep.mubr.f32.mxu0 0.0
      %151 = vmatmul.mubr.f32.gmra.mxu0 %v84
      %v152 = vpop.f32.mrf.mxu0
      %v153 = vadd.f32 %v81, %v152
      %v154 = vpop.f32.mrf.mxu0
      %155 = vdwg.mxu0
      %v156 = vtanh.pop %v153
      %v157 = vld [vmem:[%s3] sm:$0xff]
      %v158 = vld [vmem:[%s3 + $0x8] sm:$0xff]
      %v159 = vld [vmem:[%s3 + $0x10] sm:$0xff]
      %v160 = vld [vmem:[%s3 + $0x18] sm:$0xff]
      %v161 = vld [vmem:[%s4] sm:$0x1]
      %v163 = vlaneseq
      %v164 = vshrl.u32 %v163, 7
      %v165 = vsub.s32 0, %v164
      %v166 = vrot.slane %v161, %v165
      %v169 = vsel %vm44, %v156, 0
      %171 = vmatprep.subr.mxu0 0.0
      %172 = vmatpush1.msra.mxu0 0.0
      %173 = vmatprep.subr.mxu0 0.0
      %174 = vmatpush1.msra.mxu0 0.0
      %175 = vmatprep.subr.mxu0 0.0
      %176 = vmatpush1.msra.mxu0 0.0
      %177 = vmatprep.subr.mxu0 0.0
      %178 = vmatpush1.msra.mxu0 0.0
      %179 = vmatprep.subr.mxu0 0.0
      %180 = vmatpush1.msra.mxu0 0.0
      %181 = vmatprep.subr.mxu0 0.0
      %182 = vmatpush1.msra.mxu0 0.0
      %183 = vmatprep.subr.mxu0 0.0
      %184 = vmatpush1.msra.mxu0 0.0
      %185 = vmatprep.subr.mxu0 0.0
      %186 = vmatpush1.msra.mxu0 0.0
      %187 = vmatprep.subr.mxu0 0.0
      %188 = vmatpush1.msra.mxu0 0.0
      %189 = vmatprep.subr.mxu0 0.0
      %190 = vmatpush1.msra.mxu0 0.0
      %191 = vmatprep.subr.mxu0 0.0
      %192 = vmatpush1.msra.mxu0 0.0
      %193 = vmatprep.subr.mxu0 0.0
      %194 = vmatpush1.msra.mxu0 0.0
      %195 = vmatprep.subr.mxu0 0.0
      %196 = vmatpush1.msra.mxu0 %v160
      %197 = vmatprep.subr.mxu0 0.0
      %198 = vmatpush1.msra.mxu0 %v159
      %199 = vmatprep.subr.mxu0 0.0
      %200 = vmatpush1.msra.mxu0 %v158
      %201 = vmatprep.subr.mxu0 0.0
      %202 = vmatpush1.msra.mxu0 %v157
      %203 = vmatprep.subr.mxu0 0.0
      %204 = vmatpush2.msra.mxu0 0.0
      %205 = vmatprep.subr.mxu0 0.0
      %206 = vmatpush2.msra.mxu0 0.0
      %207 = vmatprep.subr.mxu0 0.0
      %208 = vmatpush2.msra.mxu0 0.0
      %209 = vmatprep.subr.mxu0 0.0
      %210 = vmatpush2.msra.mxu0 0.0
      %211 = vmatprep.subr.mxu0 0.0
      %212 = vmatpush2.msra.mxu0 0.0
      %213 = vmatprep.subr.mxu0 0.0
      %214 = vmatpush2.msra.mxu0 0.0
      %215 = vmatprep.subr.mxu0 0.0
      %216 = vmatpush2.msra.mxu0 0.0
      %217 = vmatprep.subr.mxu0 0.0
      %218 = vmatpush2.msra.mxu0 0.0
      %219 = vmatprep.subr.mxu0 0.0
      %220 = vmatpush2.msra.mxu0 0.0
      %221 = vmatprep.subr.mxu0 0.0
      %222 = vmatpush2.msra.mxu0 0.0
      %223 = vmatprep.subr.mxu0 0.0
      %224 = vmatpush2.msra.mxu0 0.0
      %225 = vmatprep.subr.mxu0 0.0
      %226 = vmatpush2.msra.mxu0 0.0
      %227 = vmatprep.subr.mxu0 0.0
      %228 = vmatpush2.msra.mxu0 0.0
      %229 = vmatprep.subr.mxu0 0.0
      %230 = vmatpush2.msra.mxu0 0.0
      %231 = vmatprep.subr.mxu0 0.0
      %232 = vmatpush2.msra.mxu0 0.0
      %233 = vmatprep.subr.mxu0 0.0
      %234 = vmatpush2.msra.mxu0 0.0
      %235 = vmatprep.mubr.f32.mxu0 0.0
      %236 = vmatmul.mubr.f32.gmra.mxu0 %v169
      %v237 = vpop.f32.mrf.mxu0
      %v238 = vadd.f32 %v166, %v237
      %v239 = vpop.f32.mrf.mxu0
      %240 = vdwg.mxu0
      %vm241 = vcmask 25600
      %242 = vst.msk [vmem:[#allocation6] sm:$0x3] %vm241, %v238
    $region33: #{tpu_custom_call.1} parent=1 // pred_fallthru
      _
    // Predicated region
    $region34: #{tpu_custom_call.1} parent=1 // pred_check
      _
    $region35: #{tpu_custom_call.1} parent=1 // pred_check_branch
      %244 = sbr.rel (0) target = $region37
    $region36: #{tpu_custom_call.1} parent=1 // pred_region
      %s246 = ssub.s32 32, 32
      %247 = vsyncadd [#allocation5], %s246
      %s249 = sshll.u32 [#allocation6], 4
      %s250 = int_to_ptr.vmem [resolvable:$true] %s249
      %252 = dma.vmem_to_hbm [thread:$0]  %s250, 32, %s5, [#allocation5]
    $region37: #{tpu_custom_call.1} parent=1 // pred_fallthru
      _
    // Predicated region
    $region38: #{tpu_custom_call.1} parent=1 // pred_check
      _
    $region39: #{tpu_custom_call.1} parent=1 // pred_check_branch
      %254 = sbr.rel (0) target = $region41
    $region40: #{tpu_custom_call.1} parent=1 // pred_region
      %255 = dma.done [#allocation5], 32
    $region41: #{tpu_custom_call.1} parent=1 // pred_fallthru
      _
    %256 = vsyncpa [#allocation4], 1
    %257 = vsyncpa [#allocation5], 1

</llo_original>
